<compile_context>
chip_gen: v7x
topology: tpu7x:2x2x1
jax: 0.10.0
libtpu: 0.0.40
codegen_flags: <defaults>
</compile_context>

<pallas_src>
import functools

import jax
import jax.numpy as jnp
from jax import lax
from jax.experimental import pallas as pl
from jax.experimental.pallas import tpu as pltpu

_CHUNK = 256  # in-kernel sub-block rows: keeps the f32 hidden act in vregs


def _round_up(n: int, m: int) -> int:
    return ((n + m - 1) // m) * m


def _cdiv(a: int, b: int) -> int:
    return (a + b - 1) // b


def _pick_batch_tile(B: int, block_b: int):
    """Returns (tile_rows, chunk_rows); tile_rows is a multiple of chunk_rows.

    Tiles are multiples of 16 rows (legal bf16 sublane tiling even on boundary
    blocks). For multi-step grids the step count is forced even and >= 4 so the
    "parallel" batch axis balances across v7x's two TensorCores.
    """
    if B <= _CHUNK:
        t = _round_up(B, 16)
        return t, t
    tb = min(_round_up(block_b, _CHUNK), _round_up(B, _CHUNK))
    n_steps = _cdiv(B, tb)
    if n_steps > 1:
        target = max(4, _round_up(n_steps, 2))
        tb = _round_up(_cdiv(B, target), _CHUNK)
    return tb, _CHUNK


def critic_kernel(x_ref, w1_ref, b1_ref, w2_ref, out_ref, *, chunk, n_chunks):
    # x:  [TB, in_dim]   w1: [in_dim, Hp]   b1: [1, Hp]   w2: [1, Hp]
    # out: [TB, 1]
    # Weights are tiny and VMEM-resident (constant index_map); hoist the loads.
    w1 = w1_ref[...]
    b1 = b1_ref[...]
    w2 = w2_ref[...]

    def body(c, carry):
        r = pl.multiple_of(c * chunk, chunk)
        # Layer 1 on the MXU; f32 accumulate regardless of input dtype.
        h = jnp.dot(x_ref[pl.ds(r, chunk), :], w1,
                    preferred_element_type=jnp.float32)
        # Bias + ReLU on the VPU; lane-dense because Hp is a multiple of 128.
        h = jnp.maximum(h + b1, 0.0)
        # Layer 2: VPU multiply + XLU lane reduction (b2 is folded into w2/b1).
        # TODO(synk): if a bundle dump shows VALU/XLU binding (bf16 + large tb),
        # switch this to jnp.dot(h, w2_col[Hp,1]) on the mostly-idle MXU.
        v = jnp.sum(h * w2, axis=-1, keepdims=True)
        out_ref[pl.ds(r, chunk), :] = v.astype(out_ref.dtype)
        return carry

    lax.fori_loop(0, n_chunks, body, 0, unroll=True)


def prepare_critic_params(w1, b1, w2, b2):
    """One-time packing of the Linear parameters (hoisted out of the call path).

    Pads hid -> Hp (multiple of 128, with one spare lane) so the hidden
    activations are fully lane-dense, and folds b2 into the spare lane:
    b1p[hid] = 1.0, w2p[hid] = b2  =>  relu(0 + 1) * b2 = b2 falls out of the
    existing lane reduction.
    """
    in_dim, hid = w1.shape
    hp = _round_up(hid + 1, 128)
    w1p = jnp.zeros((in_dim, hp), w1.dtype).at[:, :hid].set(w1)
    b1p = (jnp.zeros((1, hp), jnp.float32)
           .at[0, :hid].set(jnp.asarray(b1, jnp.float32))
           .at[0, hid].set(1.0))
    w2p = (jnp.zeros((1, hp), jnp.float32)
           .at[0, :hid].set(jnp.asarray(w2, jnp.float32))
           .at[0, hid].set(jnp.asarray(b2, jnp.float32).reshape(())))
    return w1p, b1p, w2p


def critic_forward(x, w1p, b1p, w2p, *, block_b: int = 8192):
    """Forward pass: relu(x @ w1 + b1) @ w2 + b2 -> [B, 1].

    x:   [B, in_dim]  (float32 or bfloat16)
    w1p: [in_dim, Hp], b1p/w2p: [1, Hp]  -- from prepare_critic_params().
    Output is float32, shape [B, 1].
    """
    B, in_dim = x.shape
    hp = w1p.shape[1]
    assert w1p.shape == (in_dim, hp)

    tb, chunk = _pick_batch_tile(B, block_b)
    n_chunks = tb // chunk
    grid = (_cdiv(B, tb),)

    # VMEM budget (lane-padded tiles, double-buffered) + headroom; keeps large
    # tiles legal under v5e's 16 MiB scoped default and v7x's 64 MiB physical.
    x_bytes = jnp.dtype(x.dtype).itemsize
    w_bytes = jnp.dtype(w1p.dtype).itemsize
    est = (2 * tb * 128 * x_bytes            # x tiles (in_dim lane-padded to 128)
           + 2 * tb * 128 * 4                # out tiles (lane-padded to 128)
           + 2 * (_round_up(in_dim, 8) * hp * w_bytes + 2 * 8 * hp * 4)
           + 2 * chunk * hp * 4)             # per-chunk hidden act scratch
    vmem_limit = min(48 * 1024 * 1024, max(16 * 1024 * 1024, int(est * 1.5)))

    kernel = functools.partial(critic_kernel, chunk=chunk, n_chunks=n_chunks)

    return pl.pallas_call(
        kernel,
        out_shape=jax.ShapeDtypeStruct((B, 1), jnp.float32),
        grid=grid,
        in_specs=[
            # x streams tile-by-tile over the batch axis (boundary block masked).
            pl.BlockSpec((tb, in_dim), lambda i: (i, 0)),
            # Weights/biases: constant block index -> stay VMEM-resident.
            pl.BlockSpec((in_dim, hp), lambda i: (0, 0)),
            pl.BlockSpec((1, hp), lambda i: (0, 0)),
            pl.BlockSpec((1, hp), lambda i: (0, 0)),
        ],
        out_specs=pl.BlockSpec((tb, 1), lambda i: (i, 0)),
        compiler_params=pltpu.CompilerParams(
            dimension_semantics=("parallel",),
            vmem_limit_bytes=vmem_limit),
    )(x, w1p, b1p, w2p)


def init_critic_params(key, in_dim, hid_dim):
    """PyTorch-style uniform(+/- 1/sqrt(fan_in)) init, weights as [in, out]."""
    k1, k2, k3, k4 = jax.random.split(key, 4)
    bound1 = 1.0 / jnp.sqrt(in_dim)
    bound2 = 1.0 / jnp.sqrt(hid_dim)
    w1 = jax.random.uniform(k1, (in_dim, hid_dim), jnp.float32, -bound1, bound1)
    b1 = jax.random.uniform(k2, (hid_dim,), jnp.float32, -bound1, bound1)
    w2 = jax.random.uniform(k3, (hid_dim,), jnp.float32, -bound2, bound2)
    b2 = jax.random.uniform(k4, (), jnp.float32, -bound2, bound2)
    return w1, b1, w2, b2


def _reference(x, w1, b1, w2, b2):
    h = jnp.maximum(x @ w1 + b1[None, :], 0.0)
    return (h * w2[None, :]).sum(axis=-1, keepdims=True) + b2


if __name__ == "__main__":
    # args = {'in_dim': 32, 'critic_hid_dim': 64, 'out_dim': ...} (out_dim unused).
    in_dim, hid_dim, batch = 32, 64, 8

    key = jax.random.PRNGKey(0)
    kx, kp = jax.random.split(key)
    x = jax.random.normal(kx, (batch, in_dim), dtype=jnp.float32)
    w1, b1, w2, b2 = init_critic_params(kp, in_dim, hid_dim)

    # One-time parameter packing (hoisted out of the forward path).
    w1p, b1p, w2p = prepare_critic_params(w1, b1, w2, b2)
    w1p_bf16 = w1p.astype(jnp.bfloat16)

    # --- Small-batch f32 path (single grid step, single chunk) ---
    v = jax.block_until_ready(critic_forward(x, w1p, b1p, w2p))
    v_ref = _reference(x, w1, b1, w2, b2)
    assert v.shape == (batch, 1)
    assert jnp.allclose(v, v_ref, atol=1e-4, rtol=1e-4)

    # --- bf16 streaming path (halves HBM bytes for x/w1; f32 accumulate) ---
    v_bf16 = jax.block_until_ready(
        critic_forward(x.astype(jnp.bfloat16), w1p_bf16, b1p, w2p))
    assert v_bf16.shape == (batch, 1)
    assert jnp.allclose(v_bf16, v_ref, atol=5e-2, rtol=5e-2)

    # --- Tiled path: ragged batch, multi-step grid (even step count), chunked ---
    big_b = 3000
    xb = jax.random.normal(jax.random.PRNGKey(1), (big_b, in_dim), jnp.float32)
    vb = jax.block_until_ready(
        critic_forward(xb, w1p, b1p, w2p, block_b=1024))
    vb_ref = _reference(xb, w1, b1, w2, b2)
    assert vb.shape == (big_b, 1)
    assert jnp.allclose(vb, vb_ref, atol=1e-4, rtol=1e-4)

    # --- Single big tile with internal chunking (default block_b) ---
    vb2 = jax.block_until_ready(critic_forward(xb, w1p, b1p, w2p))
    assert vb2.shape == (big_b, 1)
    assert jnp.allclose(vb2, vb_ref, atol=1e-4, rtol=1e-4)

    print("KERNEL_OK")
</pallas_src>

<mosaic_0001>
module attributes {stable_mosaic.version = 11 : i64} {
  func.func @critic_kernel(%arg0: i32, %arg1: memref<16x32xf32, #tpu.memory_space<vmem>>, %arg2: memref<32x128xf32, #tpu.memory_space<vmem>>, %arg3: memref<1x128xf32, #tpu.memory_space<vmem>>, %arg4: memref<1x128xf32, #tpu.memory_space<vmem>>, %arg5: memref<16x1xf32, #tpu.memory_space<vmem>>) attributes {dimension_semantics = [#tpu.dimension_semantics<parallel>], iteration_bounds = array<i64: 1>, scalar_prefetch = 0 : i64, scratch_operands = 0 : i64, tpu.core_type = #tpu.core_type<tc>, window_params = [{transform_indices = @transform_0, window_bounds = array<i64: 16, 32>}, {pipeline_mode = #tpu.pipeline_mode<synchronous>, transform_indices = @transform_1, window_bounds = array<i64: 32, 128>}, {pipeline_mode = #tpu.pipeline_mode<synchronous>, transform_indices = @transform_2, window_bounds = array<i64: 1, 128>}, {pipeline_mode = #tpu.pipeline_mode<synchronous>, transform_indices = @transform_3, window_bounds = array<i64: 1, 128>}, {transform_indices = @transform_4, window_bounds = array<i64: 16, 1>}]} {
    %c0 = arith.constant 0 : index
    %c0_0 = arith.constant 0 : index
    %0 = vector.load %arg2[%c0, %c0_0] : memref<32x128xf32, #tpu.memory_space<vmem>>, vector<32x128xf32>
    %c0_1 = arith.constant 0 : index
    %c0_2 = arith.constant 0 : index
    %1 = vector.load %arg3[%c0_1, %c0_2] : memref<1x128xf32, #tpu.memory_space<vmem>>, vector<1x128xf32>
    %c0_3 = arith.constant 0 : index
    %c0_4 = arith.constant 0 : index
    %2 = vector.load %arg4[%c0_3, %c0_4] : memref<1x128xf32, #tpu.memory_space<vmem>>, vector<1x128xf32>
    %c0_i32 = arith.constant 0 : i32
    %c16_i32 = arith.constant 16 : i32
    %3 = arith.muli %c0_i32, %c16_i32 : i32
    %4 = tpu.assume_multiple %3, 16 : i32
    %5 = arith.index_cast %4 : i32 to index
    %c0_5 = arith.constant 0 : index
    %6 = vector.load %arg1[%5, %c0_5] : memref<16x32xf32, #tpu.memory_space<vmem>>, vector<16x32xf32>
    %cst = arith.constant dense<0.000000e+00> : vector<16x128xf32>
    %7 = tpu.matmul %6, %0, %cst {dimension_numbers = #tpu.dot_dimension_numbers<[1], [0], [0], [1], [0, 0, 1, 1], [], []>} : vector<16x32xf32>, vector<32x128xf32>, vector<16x128xf32> -> vector<16x128xf32>
    %8 = vector.broadcast %1 : vector<1x128xf32> to vector<16x128xf32>
    %9 = arith.addf %7, %8 : vector<16x128xf32>
    %cst_6 = arith.constant 0.000000e+00 : f32
    %10 = vector.broadcast %cst_6 : f32 to vector<16x128xf32>
    %11 = arith.maximumf %9, %10 : vector<16x128xf32>
    %12 = vector.broadcast %2 : vector<1x128xf32> to vector<16x128xf32>
    %13 = arith.mulf %11, %12 : vector<16x128xf32>
    %cst_7 = arith.constant dense<0.000000e+00> : vector<16xf32>
    %14 = vector.multi_reduction <add>, %13, %cst_7 [1] : vector<16x128xf32> to vector<16xf32>
    %15 = vector.shape_cast %14 : vector<16xf32> to vector<16x1xf32>
    %16 = arith.index_cast %4 : i32 to index
    %c0_8 = arith.constant 0 : index
    %17 = vector.load %arg5[%16, %c0_8] : memref<16x1xf32, #tpu.memory_space<vmem>>, vector<16x1xf32>
    tpu.vector_store %arg5[%16, %c0_8], %15 {strides = array<i32>} : memref<16x1xf32, #tpu.memory_space<vmem>>, vector<16x1xf32>,
    %c1_i32 = arith.constant 1 : i32
    return
  }
  func.func @transform_0(%arg0: i32) -> (i32, i32) {
    %c0_i32 = arith.constant 0 : i32
    %c0_i32_0 = arith.constant 0 : i32
    return %arg0, %c0_i32 : i32, i32
  }
  func.func @transform_1(%arg0: i32) -> (i32, i32) {
    %c0_i32 = arith.constant 0 : i32
    %c0_i32_0 = arith.constant 0 : i32
    %c0_i32_1 = arith.constant 0 : i32
    return %c0_i32, %c0_i32_0 : i32, i32
  }
  func.func @transform_2(%arg0: i32) -> (i32, i32) {
    %c0_i32 = arith.constant 0 : i32
    %c0_i32_0 = arith.constant 0 : i32
    %c0_i32_1 = arith.constant 0 : i32
    return %c0_i32, %c0_i32_0 : i32, i32
  }
  func.func @transform_3(%arg0: i32) -> (i32, i32) {
    %c0_i32 = arith.constant 0 : i32
    %c0_i32_0 = arith.constant 0 : i32
    %c0_i32_1 = arith.constant 0 : i32
    return %c0_i32, %c0_i32_0 : i32, i32
  }
  func.func @transform_4(%arg0: i32) -> (i32, i32) {
    %c0_i32 = arith.constant 0 : i32
    %c0_i32_0 = arith.constant 0 : i32
    return %arg0, %c0_i32 : i32, i32
  }
}

</mosaic_0001>

<llo_original>
// kernel: tpu_custom_call.1
$region0: #{tpu_custom_call.1}
  #allocation0 [shape = 'u32[]', space=smem, size = 0x4, offset = 0x4, fixed_abs, tag = 'smem constant byte address 0x4 - core index']
  #allocation1 [shape = 'u32[144,128]{1,0:T(1,128)}', space=vmem, size = 0x12000, scoped, tag = 'internal scratch']
  %s0 = inlined_call_operand.hbm [shape: f32[8,32], index: 0, kind: input, shape index: {}]
  %s1 = inlined_call_operand.hbm [shape: f32[32,128], index: 1, kind: input, shape index: {}]
  %s2 = inlined_call_operand.vmem [shape: f32[1,128], index: 2, kind: input, shape index: {}]
  %s3 = inlined_call_operand.vmem [shape: f32[1,128], index: 3, kind: input, shape index: {}]
  %s4 = inlined_call_operand.vmem [shape: f32[8,1], index: 4, kind: output, shape index: {}]
  %s5 = sld [smem:[#allocation0]]
  $region68: #{tpu_custom_call.1} parent=0
    _
  %s7 = ssub.s32 1, %s5
  %s8 = scalar_select 0, %s7, %s5
  $region1: #{tpu_custom_call.1} parent=0
    #allocation2 [shape = 'u8[8192]{0}', space=vmem, size = 0x2000, scoped, tag = 'input window, operand 0, single buffered']
    #allocation3 [shape = 's32[1]{0}', space=sflag, size = 0x4, scoped, tag = 'scoped memory for tpu_custom_call.1']
    #allocation4 [shape = 'u8[16384]{0}', space=vmem, size = 0x4000, scoped, tag = 'input window, operand 1, single buffered']
    #allocation5 [shape = 's32[1]{0}', space=sflag, size = 0x4, scoped, tag = 'scoped memory for tpu_custom_call.1']
    #allocation6 [shape = 'u8[8192]{0}', space=vmem, size = 0x2000, scoped, tag = 'output window, operand 0, single buffered']
    %9 = vsyncpa [#allocation3], 0
    %10 = vsyncpa [#allocation5], 0
    // Predicated region
    $region2: #{tpu_custom_call.1} parent=1 // pred_check
      _
    $region3: #{tpu_custom_call.1} parent=1 // pred_check_branch
      %12 = sbr.rel (0) target = $region5
    $region4: #{tpu_custom_call.1} parent=1 // pred_region
      %s14 = ssub.s32 256, 128
      %15 = vsyncadd [#allocation3], %s14
      %s16 = sshll.u32 [#allocation2], 4
      %s17 = int_to_ptr.vmem [resolvable:$true] %s16
      %22 = dma.hbm_to_vmem [thread:$0]  %s0, 128, %s17, [#allocation3], 128, 128, 8
    $region5: #{tpu_custom_call.1} parent=1 // pred_fallthru
      _
    // Predicated region
    $region6: #{tpu_custom_call.1} parent=1 // pred_check
      _
    $region7: #{tpu_custom_call.1} parent=1 // pred_check_branch
      %24 = sbr.rel (0) target = $region9
    $region8: #{tpu_custom_call.1} parent=1 // pred_region
      %s26 = ssub.s32 512, 512
      %27 = vsyncadd [#allocation5], %s26
      %s28 = sshll.u32 [#allocation4], 4
      %s29 = int_to_ptr.vmem [resolvable:$true] %s28
      %34 = dma.hbm_to_vmem [thread:$0]  %s1, 512, %s29, [#allocation5], 128, 128, 8
    $region9: #{tpu_custom_call.1} parent=1 // pred_fallthru
      _
    // Predicated region
    $region10: #{tpu_custom_call.1} parent=1 // pred_check
      _
    $region11: #{tpu_custom_call.1} parent=1 // pred_check_branch
      %36 = sbr.rel (0) target = $region13
    $region12: #{tpu_custom_call.1} parent=1 // pred_region
      _
    $region13: #{tpu_custom_call.1} parent=1 // pred_fallthru
      _
    // Predicated region
    $region14: #{tpu_custom_call.1} parent=1 // pred_check
      _
    $region15: #{tpu_custom_call.1} parent=1 // pred_check_branch
      %38 = sbr.rel (0) target = $region17
    $region16: #{tpu_custom_call.1} parent=1 // pred_region
      _
    $region17: #{tpu_custom_call.1} parent=1 // pred_fallthru
      _
    // Predicated region
    $region18: #{tpu_custom_call.1} parent=1 // pred_check
      _
    $region19: #{tpu_custom_call.1} parent=1 // pred_check_branch
      %40 = sbr.rel (0) target = $region21
    $region20: #{tpu_custom_call.1} parent=1 // pred_region
      %41 = dma.done [#allocation3], 256
    $region21: #{tpu_custom_call.1} parent=1 // pred_fallthru
      _
    // Predicated region
    $region22: #{tpu_custom_call.1} parent=1 // pred_check
      _
    $region23: #{tpu_custom_call.1} parent=1 // pred_check_branch
      %43 = sbr.rel (0) target = $region25
    $region24: #{tpu_custom_call.1} parent=1 // pred_region
      %44 = dma.done [#allocation5], 512
    $region25: #{tpu_custom_call.1} parent=1 // pred_fallthru
      _
    %v45 = vld [vmem:[#allocation4] sm:$0xff]
    %v46 = vld [vmem:[#allocation4 + $0x8] sm:$0xff]
    %v47 = vld [vmem:[#allocation4 + $0x10] sm:$0xff]
    %v48 = vld [vmem:[#allocation4 + $0x18] sm:$0xff]
    %v49 = vld [vmem:[%s2] sm:$0x1]
    %v50 = vld [vmem:[%s3] sm:$0x1]
    %v51 = vld [vmem:[#allocation2] sm:$0xff]
    %v52 = vld [vmem:[#allocation2 + $0x8] sm:$0xff]
    %v54 = vlaneseq
    %v55 = vshrl.u32 %v54, 7
    %v56 = vsub.s32 0, %v55
    %v57 = vrot.slane %v49, %v56
    %vm59 = vcmask 261120
    %v61 = vsel %vm59, %v51, 0
    %v64 = vsel %vm59, %v52, 0
    %66 = vmatprep.subr.mxu0 0.0
    %67 = vmatpush1.msra.mxu0 %v45
    %68 = vmatprep.subr.mxu0 0.0
    %69 = vmatpush1.msra.mxu0 %v46
    %70 = vmatprep.subr.mxu0 0.0
    %71 = vmatpush1.msra.mxu0 %v47
    %72 = vmatprep.subr.mxu0 0.0
    %73 = vmatpush1.msra.mxu0 %v48
    %74 = vmatprep.subr.mxu0 0.0
    %75 = vmatpush1.msra.mxu0 0.0
    %76 = vmatprep.subr.mxu0 0.0
    %77 = vmatpush1.msra.mxu0 0.0
    %78 = vmatprep.subr.mxu0 0.0
    %79 = vmatpush1.msra.mxu0 0.0
    %80 = vmatprep.subr.mxu0 0.0
    %81 = vmatpush1.msra.mxu0 0.0
    %82 = vmatprep.subr.mxu0 0.0
    %83 = vmatpush1.msra.mxu0 0.0
    %84 = vmatprep.subr.mxu0 0.0
    %85 = vmatpush1.msra.mxu0 0.0
    %86 = vmatprep.subr.mxu0 0.0
    %87 = vmatpush1.msra.mxu0 0.0
    %88 = vmatprep.subr.mxu0 0.0
    %89 = vmatpush1.msra.mxu0 0.0
    %90 = vmatprep.subr.mxu0 0.0
    %91 = vmatpush1.msra.mxu0 0.0
    %92 = vmatprep.subr.mxu0 0.0
    %93 = vmatpush1.msra.mxu0 0.0
    %94 = vmatprep.subr.mxu0 0.0
    %95 = vmatpush1.msra.mxu0 0.0
    %96 = vmatprep.subr.mxu0 0.0
    %97 = vmatpush1.msra.mxu0 0.0
    %98 = vmatprep.subr.mxu0 0.0
    %99 = vmatpush1.msra.mxu0 0.0
    %100 = vmatprep.subr.mxu0 0.0
    %101 = vmatpush1.msra.mxu0 0.0
    %102 = vmatprep.subr.mxu0 0.0
    %103 = vmatpush1.msra.mxu0 0.0
    %104 = vmatprep.subr.mxu0 0.0
    %105 = vmatpush1.msra.mxu0 0.0
    %106 = vmatprep.subr.mxu0 0.0
    %107 = vmatpush1.msra.mxu0 0.0
    %108 = vmatprep.subr.mxu0 0.0
    %109 = vmatpush1.msra.mxu0 0.0
    %110 = vmatprep.subr.mxu0 0.0
    %111 = vmatpush1.msra.mxu0 0.0
    %112 = vmatprep.subr.mxu0 0.0
    %113 = vmatpush1.msra.mxu0 0.0
    %114 = vmatprep.subr.mxu0 0.0
    %115 = vmatpush1.msra.mxu0 0.0
    %116 = vmatprep.subr.mxu0 0.0
    %117 = vmatpush1.msra.mxu0 0.0
    %118 = vmatprep.subr.mxu0 0.0
    %119 = vmatpush1.msra.mxu0 0.0
    %120 = vmatprep.subr.mxu0 0.0
    %121 = vmatpush1.msra.mxu0 0.0
    %122 = vmatprep.subr.mxu0 0.0
    %123 = vmatpush1.msra.mxu0 0.0
    %124 = vmatprep.subr.mxu0 0.0
    %125 = vmatpush1.msra.mxu0 0.0
    %126 = vmatprep.subr.mxu0 0.0
    %127 = vmatpush1.msra.mxu0 0.0
    %128 = vmatprep.subr.mxu0 0.0
    %129 = vmatpush1.msra.mxu0 0.0
    %130 = vmatprep.mubr.f32.mxu0 0.0
    %131 = vmatmul.mubr.f32.gmra.mrb[0].mxu0 %v61
    %v132 = vpop.f32.mrb[0].mxu0
    %v133 = vadd.f32 %v57, %v132
    %v134 = vpop.f32.mrb[0].mxu0
    %135 = vmatprep.mubr.f32.mxu0 0.0
    %136 = vmatmul.mubr.f32.gmra.mrb[0].mxu0 %v64
    %v137 = vpop.f32.mrb[0].mxu0
    %v138 = vadd.f32 %v57, %v137
    %v139 = vpop.f32.mrb[0].mxu0
    %140 = vdwg.mxu0
    %v141 = vmax.f32 %v133, 0.0
    %v142 = vmax.f32 %v138, 0.0
    %v144 = vlaneseq
    %v145 = vshrl.u32 %v144, 7
    %v146 = vsub.s32 0, %v145
    %v147 = vrot.slane %v50, %v146
    %v149 = vmul.f32 %v141, %v147
    %v150 = vmul.f32 %v142, %v147
    %151 = vadd.xlane.f32.xlu0 %v149
    %v152 = vpop.xlane.xlu0 %151
    %153 = vadd.xlane.f32.xlu0 %v150
    %v154 = vpop.xlane.xlu0 %153
    %vm155 = vcmask 7168
    %156 = vst.msk [vmem:[#allocation6] sm:$0xff] %vm155, %v152
    %157 = vst.msk [vmem:[#allocation6 + $0x8] sm:$0xff] %vm155, %v154
    // Predicated region
    $region26: #{tpu_custom_call.1} parent=1 // pred_check
      _
    $region27: #{tpu_custom_call.1} parent=1 // pred_check_branch
      %159 = sbr.rel (0) target = $region29
    $region28: #{tpu_custom_call.1} parent=1 // pred_region
      // Predicated region
      $region30: #{tpu_custom_call.1} parent=28 // pred_check
        _
      $region31: #{tpu_custom_call.1} parent=28 // pred_check_branch
        %161 = sbr.rel (0) target = $region33
      $region32: #{tpu_custom_call.1} parent=28 // pred_region
        // Predicated region
        $region34: #{tpu_custom_call.1} parent=32 // pred_check
          _
        $region35: #{tpu_custom_call.1} parent=32 // pred_check_branch
          %163 = sbr.rel (0) target = $region37
        $region36: #{tpu_custom_call.1} parent=32 // pred_region
          // Predicated region
          $region49: #{tpu_custom_call.1} parent=36 // pred_check
            _
          $region50: #{tpu_custom_call.1} parent=36 // pred_check_branch
            %178 = sbr.rel (0) target = $region52
          $region51: #{tpu_custom_call.1} parent=36 // pred_region
            loop: start=0, step=1, limit=1
            $region53: #{tpu_custom_call.1} parent=51 // loop_pre_header
              _
            $region54: #{tpu_custom_call.1} parent=51 // loop_header
              %s180 = sphi 0, %s184
              %p181 = scmp.ge.s32.totalorder %s180, 1
              %s185 = sphi [#allocation6], [#allocation6]
              %s186 = sphi %s4, %s4
            $region55: #{tpu_custom_call.1} parent=51 // loop_header_branch
              %183 = sbr.rel (%p181) target = $region59
            $region56: #{tpu_custom_call.1} parent=51 // loop_body
              %v187 = vld [vmem:[%s185] sm:$0xff]
              %188 = vst [vmem:[%s186] sm:$0xff] %v187
            $region57: #{tpu_custom_call.1} parent=51 // loop_footer
              %s184 = sadd.s32 1, %s180
            $region58: #{tpu_custom_call.1} parent=51 // loop_footer_branch
              %179 = sbr.rel target = $region54
            $region59: #{tpu_custom_call.1} parent=51 // loop_exit
              _
          $region52: #{tpu_custom_call.1} parent=36 // pred_fallthru
            _
          // Predicated region
          $region60: #{tpu_custom_call.1} parent=36 // pred_check
            _
          $region61: #{tpu_custom_call.1} parent=36 // pred_check_branch
            %190 = sbr.rel target = $region63
          $region62: #{tpu_custom_call.1} parent=36 // pred_region
            _
          $region63: #{tpu_custom_call.1} parent=36 // pred_fallthru
            _
        $region37: #{tpu_custom_call.1} parent=32 // pred_fallthru
          _
        // Predicated region
        $region38: #{tpu_custom_call.1} parent=32 // pred_check
          _
        $region39: #{tpu_custom_call.1} parent=32 // pred_check_branch
          %165 = sbr.rel target = $region41
        $region40: #{tpu_custom_call.1} parent=32 // pred_region
          loop: start=0, step=1, limit=1
          $region42: #{tpu_custom_call.1} parent=40 // loop_pre_header
            _
          $region43: #{tpu_custom_call.1} parent=40 // loop_header
            %s168 = sphi 0, %s172
            %p169 = scmp.ge.s32.totalorder %s168, 1
            %s173 = sphi [#allocation6], [#allocation6]
            %s174 = sphi %s4, %s4
          $region44: #{tpu_custom_call.1} parent=40 // loop_header_branch
            %171 = sbr.rel (%p169) target = $region48
          $region45: #{tpu_custom_call.1} parent=40 // loop_body
            %v175 = vld [vmem:[%s173] sm:$0xff]
            %176 = vst [vmem:[%s174] sm:$0xff] %v175
          $region46: #{tpu_custom_call.1} parent=40 // loop_footer
            %s172 = sadd.s32 1, %s168
          $region47: #{tpu_custom_call.1} parent=40 // loop_footer_branch
            %167 = sbr.rel target = $region43
          $region48: #{tpu_custom_call.1} parent=40 // loop_exit
            _
        $region41: #{tpu_custom_call.1} parent=32 // pred_fallthru
          _
      $region33: #{tpu_custom_call.1} parent=28 // pred_fallthru
        _
      %191 = vnop
    $region29: #{tpu_custom_call.1} parent=1 // pred_fallthru
      _
    // Predicated region
    $region64: #{tpu_custom_call.1} parent=1 // pred_check
      _
    $region65: #{tpu_custom_call.1} parent=1 // pred_check_branch
      %193 = sbr.rel (0) target = $region67
    $region66: #{tpu_custom_call.1} parent=1 // pred_region
      _
    $region67: #{tpu_custom_call.1} parent=1 // pred_fallthru
      _
    %194 = vsyncpa [#allocation3], 1
    %195 = vsyncpa [#allocation5], 1

</llo_original>
